<compile_context>
chip_gen: v5e
topology: v5e:2x2
jax: 0.10.0
libtpu: 0.0.40
codegen_flags: <defaults>
</compile_context>

<pallas_src>
import jax
import jax.numpy as jnp
from jax.experimental import pallas as pl
from jax.experimental.pallas import tpu as pltpu

LANES = 128
SUBLANES = 8


def _round_up(n, m):
    return ((n + m - 1) // m) * m


# --------------------------------------------------------------------------- #
# Kernel
# --------------------------------------------------------------------------- #
def _make_kernel(in_pad, r_bsh, r_w1, r_b1, r_w2, r_b2, out_lanes):
    """Builds the kernel with static, sublane-aligned row offsets into the slab."""

    def kernel(x_ref, p_ref, out_ref):
        x = x_ref[...]                                   # (tb, in_pad)

        # shared = ReLU(x @ W_sh + b_sh)  -> lanes [hidden:128) stay 0
        w_sh = p_ref[0:in_pad, :]                        # (in_pad, 128)
        b_sh = p_ref[r_bsh:r_bsh + 1, :]                 # (1, 128)
        h = jnp.maximum(
            jnp.dot(x, w_sh, preferred_element_type=jnp.float32) + b_sh, 0.0)

        # fused actor-1 | critic-1 hidden layer: hc = ReLU(h @ [W_a1 | W_c1] + b)
        w1 = p_ref[r_w1:r_w1 + LANES, :]                 # (128, 128)
        b1 = p_ref[r_b1:r_b1 + 1, :]
        hc = jnp.maximum(
            jnp.dot(h, w1, preferred_element_type=jnp.float32) + b1, 0.0)

        # fused output layer with block-diagonal weight:
        #   lanes [0:out_dim) = actor mean, lane out_dim = critic value, rest 0
        w2 = p_ref[r_w2:r_w2 + LANES, :]                 # (128, 128)
        b2 = p_ref[r_b2:r_b2 + 1, :]
        out = jnp.dot(hc, w2, preferred_element_type=jnp.float32) + b2

        if out_lanes == LANES:
            out_ref[...] = out.astype(out_ref.dtype)               # unmasked full-width store
        else:
            out_ref[...] = out[:, :out_lanes].astype(out_ref.dtype)  # compact writeback

    return kernel


# --------------------------------------------------------------------------- #
# Parameter packing (runs ONCE per parameter update, outside the forward jit)
# --------------------------------------------------------------------------- #
def pack_params(params, input_dim, hidden_dim, output_dim):
    """Packs all weights/biases into one (K, 128) f32 slab (single input DMA)."""
    # TODO(synk): for hidden_dim > 64 or output_dim + 1 > 128 the fused heads no
    # longer fit in a single 128-lane pass; a lane-tiled variant would be needed.
    assert 2 * hidden_dim <= LANES and output_dim + 1 <= LANES

    in_pad = _round_up(input_dim, SUBLANES)
    h = hidden_dim

    seg_wsh = (jnp.zeros((in_pad, LANES), jnp.float32)
               .at[:input_dim, :h].set(params["w_sh"]))
    seg_bsh = (jnp.zeros((SUBLANES, LANES), jnp.float32)
               .at[0, :h].set(params["b_sh"][0]))

    seg_w1 = (jnp.zeros((LANES, LANES), jnp.float32)
              .at[:h, :h].set(params["w_a1"])
              .at[:h, h:2 * h].set(params["w_c1"]))
    seg_b1 = (jnp.zeros((SUBLANES, LANES), jnp.float32)
              .at[0, :h].set(params["b_a1"][0])
              .at[0, h:2 * h].set(params["b_c1"][0]))

    seg_w2 = (jnp.zeros((LANES, LANES), jnp.float32)
              .at[:h, :output_dim].set(params["w_a2"])
              .at[h:2 * h, output_dim].set(params["w_c2"][:, 0]))
    seg_b2 = (jnp.zeros((SUBLANES, LANES), jnp.float32)
              .at[0, :output_dim].set(params["b_a2"][0])
              .at[0, output_dim].set(params["b_c2"][0, 0]))

    slab = jnp.concatenate(
        [seg_wsh, seg_bsh, seg_w1, seg_b1, seg_w2, seg_b2], axis=0)

    offsets = dict(
        in_pad=in_pad,
        r_bsh=in_pad,
        r_w1=in_pad + SUBLANES,
        r_b1=in_pad + SUBLANES + LANES,
        r_w2=in_pad + 2 * SUBLANES + LANES,
        r_b2=in_pad + 2 * SUBLANES + 2 * LANES,
        p_rows=in_pad + 3 * SUBLANES + 2 * LANES,
    )
    return slab, offsets


# --------------------------------------------------------------------------- #
# Batch tiling policy
# --------------------------------------------------------------------------- #
def _tile_batch(B):
    """Pick (tb, b_pad): one big step for small B; for large B use 2048-row
    tiles but keep the grid >= 2 so the batch axis can shard across both
    TensorCores on v7x."""
    b8 = _round_up(B, SUBLANES)
    if b8 <= 1024:
        return b8, b8
    tb = 2048
    b_pad = _round_up(b8, tb)
    if b_pad // tb < 2:
        tb = _round_up(b_pad // 2, SUBLANES)
        b_pad = _round_up(b8, tb)
    return tb, b_pad


# --------------------------------------------------------------------------- #
# Forward (jitted; takes the pre-packed slab and pre-computed std)
# --------------------------------------------------------------------------- #
def build_forward(input_dim, hidden_dim, output_dim, offsets):
    in_pad = offsets["in_pad"]
    p_rows = offsets["p_rows"]

    @jax.jit
    def forward(x, slab, std):
        B = x.shape[0]
        tb, b_pad = _tile_batch(B)

        # small B: lane-dense 128-lane store (step overhead dominates);
        # large B: compact writeback (HBM-bound regime -> fewer bytes wins).
        out_lanes = LANES if b_pad <= 1024 else _round_up(output_dim + 1, SUBLANES)

        # avoid an extra HBM pass over x when it's already the right shape
        if (b_pad, in_pad) != (B, input_dim):
            x_in = jnp.pad(x, ((0, b_pad - B), (0, in_pad - input_dim)))
        else:
            x_in = x

        kernel = _make_kernel(in_pad, offsets["r_bsh"], offsets["r_w1"],
                              offsets["r_b1"], offsets["r_w2"], offsets["r_b2"],
                              out_lanes)

        out = pl.pallas_call(
            kernel,
            out_shape=jax.ShapeDtypeStruct((b_pad, out_lanes), jnp.float32),
            grid_spec=pltpu.PrefetchScalarGridSpec(
                num_scalar_prefetch=0,
                grid=(b_pad // tb,),
                in_specs=[
                    pl.BlockSpec((tb, in_pad), lambda i: (i, 0)),
                    # constant index_map -> slab is DMA'd once and reused
                    pl.BlockSpec((p_rows, LANES), lambda i: (0, 0)),
                ],
                out_specs=pl.BlockSpec((tb, out_lanes), lambda i: (i, 0)),
            ),
            compiler_params=pltpu.CompilerParams(
                dimension_semantics=("parallel",)),
        )(x_in, slab)

        mean = out[:B, :output_dim]
        value = out[:B, output_dim:output_dim + 1]
        return mean, std, value

    return forward


# --------------------------------------------------------------------------- #
# Parameter init & pure-JAX reference
# --------------------------------------------------------------------------- #
def init_params(key, input_dim, hidden_dim, output_dim):
    """Deterministic init mimicking nn.Linear default (uniform +/- 1/sqrt(fan_in)).
    Weights stored as (in_features, out_features); biases as (1, out_features)."""
    def linear(k, fan_in, fan_out):
        kw, kb = jax.random.split(k)
        bound = 1.0 / jnp.sqrt(float(fan_in))
        w = jax.random.uniform(kw, (fan_in, fan_out), jnp.float32, -bound, bound)
        b = jax.random.uniform(kb, (1, fan_out), jnp.float32, -bound, bound)
        return w, b

    keys = jax.random.split(key, 5)
    w_sh, b_sh = linear(keys[0], input_dim, hidden_dim)
    w_a1, b_a1 = linear(keys[1], hidden_dim, hidden_dim)
    w_a2, b_a2 = linear(keys[2], hidden_dim, output_dim)
    w_c1, b_c1 = linear(keys[3], hidden_dim, hidden_dim)
    w_c2, b_c2 = linear(keys[4], hidden_dim, 1)
    log_std = jnp.zeros((output_dim,), jnp.float32)
    return dict(w_sh=w_sh, b_sh=b_sh, w_a1=w_a1, b_a1=b_a1, w_a2=w_a2, b_a2=b_a2,
                w_c1=w_c1, b_c1=b_c1, w_c2=w_c2, b_c2=b_c2, log_std=log_std)


def reference_forward(x, p):
    h = jnp.maximum(x @ p["w_sh"] + p["b_sh"], 0.0)
    a = jnp.maximum(h @ p["w_a1"] + p["b_a1"], 0.0)
    mean = a @ p["w_a2"] + p["b_a2"]
    c = jnp.maximum(h @ p["w_c1"] + p["b_c1"], 0.0)
    value = c @ p["w_c2"] + p["b_c2"]
    std = jnp.exp(p["log_std"])
    return mean, std, value


if __name__ == "__main__":
    # BipedalWalker-v3: state dim 24, action dim 4; small hidden for the demo.
    B, input_dim, hidden_dim, output_dim = 2, 24, 32, 4

    key = jax.random.PRNGKey(0)
    kx, kp = jax.random.split(key)
    x = jax.random.normal(kx, (B, input_dim), jnp.float32)
    params = init_params(kp, input_dim, hidden_dim, output_dim)

    # Done ONCE per parameter update (not per forward): pack slab, compute std.
    slab, offsets = pack_params(params, input_dim, hidden_dim, output_dim)
    std_precomputed = jnp.exp(params["log_std"])
    forward = build_forward(input_dim, hidden_dim, output_dim, offsets)

    mean, std, value = forward(x, slab, std_precomputed)
    jax.block_until_ready((mean, std, value))

    # sanity check against a pure-JAX reference
    mean_r, std_r, value_r = reference_forward(x, params)
    assert mean.shape == (B, output_dim)
    assert std.shape == (output_dim,)
    assert value.shape == (B, 1)
    assert jnp.allclose(mean, mean_r, atol=1e-5)
    assert jnp.allclose(std, std_r, atol=1e-6)
    assert jnp.allclose(value, value_r, atol=1e-5)

    print("KERNEL_OK")
</pallas_src>

<mosaic_0001>
module attributes {stable_mosaic.version = 11 : i64} {
  func.func @kernel(%arg0: i32, %arg1: memref<8x24xf32, #tpu.memory_space<vmem>>, %arg2: memref<304x128xf32, #tpu.memory_space<vmem>>, %arg3: memref<8x128xf32, #tpu.memory_space<vmem>>) attributes {dimension_semantics = [#tpu.dimension_semantics<parallel>], iteration_bounds = array<i64: 1>, scalar_prefetch = 0 : i64, scratch_operands = 0 : i64, tpu.core_type = #tpu.core_type<tc>, window_params = [{transform_indices = @transform_0, window_bounds = array<i64: 8, 24>}, {pipeline_mode = #tpu.pipeline_mode<synchronous>, transform_indices = @transform_1, window_bounds = array<i64: 304, 128>}, {transform_indices = @transform_2, window_bounds = array<i64: 8, 128>}]} {
    %c0 = arith.constant 0 : index
    %c0_0 = arith.constant 0 : index
    %0 = vector.load %arg1[%c0, %c0_0] : memref<8x24xf32, #tpu.memory_space<vmem>>, vector<8x24xf32>
    %c0_1 = arith.constant 0 : index
    %c0_2 = arith.constant 0 : index
    %1 = vector.load %arg2[%c0_1, %c0_2] : memref<304x128xf32, #tpu.memory_space<vmem>>, vector<24x128xf32>
    %c24 = arith.constant 24 : index
    %c0_3 = arith.constant 0 : index
    %2 = vector.load %arg2[%c24, %c0_3] : memref<304x128xf32, #tpu.memory_space<vmem>>, vector<1x128xf32>
    %cst = arith.constant dense<0.000000e+00> : vector<8x128xf32>
    %3 = tpu.matmul %0, %1, %cst {dimension_numbers = #tpu.dot_dimension_numbers<[1], [0], [0], [1], [0, 0, 1, 1], [], []>} : vector<8x24xf32>, vector<24x128xf32>, vector<8x128xf32> -> vector<8x128xf32>
    %4 = vector.broadcast %2 : vector<1x128xf32> to vector<8x128xf32>
    %5 = arith.addf %3, %4 : vector<8x128xf32>
    %cst_4 = arith.constant 0.000000e+00 : f32
    %6 = vector.broadcast %cst_4 : f32 to vector<8x128xf32>
    %7 = arith.maximumf %5, %6 : vector<8x128xf32>
    %c32 = arith.constant 32 : index
    %c0_5 = arith.constant 0 : index
    %8 = vector.load %arg2[%c32, %c0_5] : memref<304x128xf32, #tpu.memory_space<vmem>>, vector<128x128xf32>
    %c160 = arith.constant 160 : index
    %c0_6 = arith.constant 0 : index
    %9 = vector.load %arg2[%c160, %c0_6] : memref<304x128xf32, #tpu.memory_space<vmem>>, vector<1x128xf32>
    %cst_7 = arith.constant dense<0.000000e+00> : vector<8x128xf32>
    %10 = tpu.matmul %7, %8, %cst_7 {dimension_numbers = #tpu.dot_dimension_numbers<[1], [0], [0], [1], [0, 0, 1, 1], [], []>} : vector<8x128xf32>, vector<128x128xf32>, vector<8x128xf32> -> vector<8x128xf32>
    %11 = vector.broadcast %9 : vector<1x128xf32> to vector<8x128xf32>
    %12 = arith.addf %10, %11 : vector<8x128xf32>
    %cst_8 = arith.constant 0.000000e+00 : f32
    %13 = vector.broadcast %cst_8 : f32 to vector<8x128xf32>
    %14 = arith.maximumf %12, %13 : vector<8x128xf32>
    %c168 = arith.constant 168 : index
    %c0_9 = arith.constant 0 : index
    %15 = vector.load %arg2[%c168, %c0_9] : memref<304x128xf32, #tpu.memory_space<vmem>>, vector<128x128xf32>
    %c296 = arith.constant 296 : index
    %c0_10 = arith.constant 0 : index
    %16 = vector.load %arg2[%c296, %c0_10] : memref<304x128xf32, #tpu.memory_space<vmem>>, vector<1x128xf32>
    %cst_11 = arith.constant dense<0.000000e+00> : vector<8x128xf32>
    %17 = tpu.matmul %14, %15, %cst_11 {dimension_numbers = #tpu.dot_dimension_numbers<[1], [0], [0], [1], [0, 0, 1, 1], [], []>} : vector<8x128xf32>, vector<128x128xf32>, vector<8x128xf32> -> vector<8x128xf32>
    %18 = vector.broadcast %16 : vector<1x128xf32> to vector<8x128xf32>
    %19 = arith.addf %17, %18 : vector<8x128xf32>
    %c0_12 = arith.constant 0 : index
    %c0_13 = arith.constant 0 : index
    %20 = vector.load %arg3[%c0_12, %c0_13] : memref<8x128xf32, #tpu.memory_space<vmem>>, vector<8x128xf32>
    tpu.vector_store %arg3[%c0_12, %c0_13], %19 {strides = array<i32>} : memref<8x128xf32, #tpu.memory_space<vmem>>, vector<8x128xf32>,
    return
  }
  func.func @transform_0(%arg0: i32) -> (i32, i32) {
    %c0_i32 = arith.constant 0 : i32
    %c0_i32_0 = arith.constant 0 : i32
    return %arg0, %c0_i32 : i32, i32
  }
  func.func @transform_1(%arg0: i32) -> (i32, i32) {
    %c0_i32 = arith.constant 0 : i32
    %c0_i32_0 = arith.constant 0 : i32
    %c0_i32_1 = arith.constant 0 : i32
    return %c0_i32, %c0_i32_0 : i32, i32
  }
  func.func @transform_2(%arg0: i32) -> (i32, i32) {
    %c0_i32 = arith.constant 0 : i32
    %c0_i32_0 = arith.constant 0 : i32
    return %arg0, %c0_i32 : i32, i32
  }
}

</mosaic_0001>

<llo_original>
// kernel: forward.1
$region0: #{forward.1}
  #allocation0 [shape = 'u32[]', space=smem, size = 0x4, offset = 0x4, fixed_abs, tag = 'smem constant byte address 0x4 - core index']
  #allocation1 [shape = 'u32[72,128]{1,0:T(1,128)}', space=vmem, size = 0x9000, scoped, tag = 'internal scratch']
  %s0 = inlined_call_operand.vmem [shape: f32[8,24], index: 0, kind: input, shape index: {}]
  %s1 = inlined_call_operand.hbm [shape: f32[304,128], index: 1, kind: input, shape index: {}]
  %s2 = inlined_call_operand.vmem [shape: f32[8,128], index: 2, kind: output, shape index: {}]
  %s3 = sld [smem:[#allocation0]]
  $region22: #{forward.1} parent=0
    _
  %s5 = ssub.s32 1, %s3
  %s6 = scalar_select 0, %s5, %s3
  $region1: #{forward.1} parent=0
    #allocation2 [shape = 'u8[155648]{0}', space=vmem, size = 0x26000, scoped, tag = 'input window, operand 1, single buffered']
    #allocation3 [shape = 's32[1]{0}', space=sflag, size = 0x4, scoped, tag = 'scoped memory for forward.1']
    %7 = vsyncpa [#allocation3], 0
    // Predicated region
    $region2: #{forward.1} parent=1 // pred_check
      _
    $region3: #{forward.1} parent=1 // pred_check_branch
      %9 = sbr.rel (0) target = $region5
    $region4: #{forward.1} parent=1 // pred_region
      _
    $region5: #{forward.1} parent=1 // pred_fallthru
      _
    // Predicated region
    $region6: #{forward.1} parent=1 // pred_check
      _
    $region7: #{forward.1} parent=1 // pred_check_branch
      %11 = sbr.rel (0) target = $region9
    $region8: #{forward.1} parent=1 // pred_region
      %13 = vsyncadd [#allocation3], 0
      %s14 = sshll.u32 %s1, 4
      %s15 = int_to_ptr.hbm [resolvable:$true] %s14
      %s16 = sshll.u32 [#allocation2], 4
      %s17 = int_to_ptr.vmem [resolvable:$true] %s16
      %22 = dma.hbm_to_vmem [thread:$0]  %s15, 4864, %s17, [#allocation3], 128, 128, 8
    $region9: #{forward.1} parent=1 // pred_fallthru
      _
    // Predicated region
    $region10: #{forward.1} parent=1 // pred_check
      _
    $region11: #{forward.1} parent=1 // pred_check_branch
      %24 = sbr.rel (0) target = $region13
    $region12: #{forward.1} parent=1 // pred_region
      %26 = dma.done [#allocation3], 4864
    $region13: #{forward.1} parent=1 // pred_fallthru
      _
    %v27 = vld [vmem:[%s0] sm:$0xff]
    %v28 = vld [vmem:[#allocation2] sm:$0xff]
    %v29 = vld [vmem:[#allocation2 + $0x8] sm:$0xff]
    %v30 = vld [vmem:[#allocation2 + $0x10] sm:$0xff]
    %v31 = vld [vmem:[#allocation2 + $0x18] sm:$0x1]
    %v32 = vperm.slane %v31, 0
    %vm33 = vcmask 195584
    %v35 = vsel %vm33, %v27, 0
    %37 = vmatpush.msra.mxu0 0.0
    %38 = vmatpush.msra.mxu0 0.0
    %39 = vmatpush.msra.mxu0 0.0
    %40 = vmatpush.msra.mxu0 0.0
    %41 = vmatpush.msra.mxu0 0.0
    %42 = vmatpush.msra.mxu0 0.0
    %43 = vmatpush.msra.mxu0 0.0
    %44 = vmatpush.msra.mxu0 0.0
    %45 = vmatpush.msra.mxu0 0.0
    %46 = vmatpush.msra.mxu0 0.0
    %47 = vmatpush.msra.mxu0 0.0
    %48 = vmatpush.msra.mxu0 0.0
    %49 = vmatpush.msra.mxu0 0.0
    %50 = vmatpush.msra.mxu0 %v30
    %51 = vmatpush.msra.mxu0 %v29
    %52 = vmatpush.msra.mxu0 %v28
    %53 = vmatmul.f32.gmra.mxu0 %v35
    %v54 = vpop.f32.mrf.mxu0
    %v55 = vadd.f32 %v32, %v54
    %56 = vdwg.mxu0
    %v57 = vmax.f32 %v55, 0.0
    %v58 = vld [vmem:[#allocation2 + $0x20] sm:$0xff]
    %v59 = vld [vmem:[#allocation2 + $0x28] sm:$0xff]
    %v60 = vld [vmem:[#allocation2 + $0x30] sm:$0xff]
    %v61 = vld [vmem:[#allocation2 + $0x38] sm:$0xff]
    %v62 = vld [vmem:[#allocation2 + $0x40] sm:$0xff]
    %v63 = vld [vmem:[#allocation2 + $0x48] sm:$0xff]
    %v64 = vld [vmem:[#allocation2 + $0x50] sm:$0xff]
    %v65 = vld [vmem:[#allocation2 + $0x58] sm:$0xff]
    %v66 = vld [vmem:[#allocation2 + $0x60] sm:$0xff]
    %v67 = vld [vmem:[#allocation2 + $0x68] sm:$0xff]
    %v68 = vld [vmem:[#allocation2 + $0x70] sm:$0xff]
    %v69 = vld [vmem:[#allocation2 + $0x78] sm:$0xff]
    %v70 = vld [vmem:[#allocation2 + $0x80] sm:$0xff]
    %v71 = vld [vmem:[#allocation2 + $0x88] sm:$0xff]
    %v72 = vld [vmem:[#allocation2 + $0x90] sm:$0xff]
    %v73 = vld [vmem:[#allocation2 + $0x98] sm:$0xff]
    %v74 = vld [vmem:[#allocation2 + $0xa0] sm:$0x1]
    %v75 = vperm.slane %v74, 0
    %76 = vmatpush.msra.mxu0 %v73
    %77 = vmatpush.msra.mxu0 %v72
    %78 = vmatpush.msra.mxu0 %v71
    %79 = vmatpush.msra.mxu0 %v70
    %80 = vmatpush.msra.mxu0 %v69
    %81 = vmatpush.msra.mxu0 %v68
    %82 = vmatpush.msra.mxu0 %v67
    %83 = vmatpush.msra.mxu0 %v66
    %84 = vmatpush.msra.mxu0 %v65
    %85 = vmatpush.msra.mxu0 %v64
    %86 = vmatpush.msra.mxu0 %v63
    %87 = vmatpush.msra.mxu0 %v62
    %88 = vmatpush.msra.mxu0 %v61
    %89 = vmatpush.msra.mxu0 %v60
    %90 = vmatpush.msra.mxu0 %v59
    %91 = vmatpush.msra.mxu0 %v58
    %92 = vmatmul.f32.gmra.mxu0 %v57
    %v93 = vpop.f32.mrf.mxu0
    %v94 = vadd.f32 %v75, %v93
    %95 = vdwg.mxu0
    %v96 = vmax.f32 %v94, 0.0
    %v97 = vld [vmem:[#allocation2 + $0xa8] sm:$0xff]
    %v98 = vld [vmem:[#allocation2 + $0xb0] sm:$0xff]
    %v99 = vld [vmem:[#allocation2 + $0xb8] sm:$0xff]
    %v100 = vld [vmem:[#allocation2 + $0xc0] sm:$0xff]
    %v101 = vld [vmem:[#allocation2 + $0xc8] sm:$0xff]
    %v102 = vld [vmem:[#allocation2 + $0xd0] sm:$0xff]
    %v103 = vld [vmem:[#allocation2 + $0xd8] sm:$0xff]
    %v104 = vld [vmem:[#allocation2 + $0xe0] sm:$0xff]
    %v105 = vld [vmem:[#allocation2 + $0xe8] sm:$0xff]
    %v106 = vld [vmem:[#allocation2 + $0xf0] sm:$0xff]
    %v107 = vld [vmem:[#allocation2 + $0xf8] sm:$0xff]
    %v108 = vld [vmem:[#allocation2 + $0x100] sm:$0xff]
    %v109 = vld [vmem:[#allocation2 + $0x108] sm:$0xff]
    %v110 = vld [vmem:[#allocation2 + $0x110] sm:$0xff]
    %v111 = vld [vmem:[#allocation2 + $0x118] sm:$0xff]
    %v112 = vld [vmem:[#allocation2 + $0x120] sm:$0xff]
    %v113 = vld [vmem:[#allocation2 + $0x128] sm:$0x1]
    %v114 = vperm.slane %v113, 0
    %115 = vmatpush.msra.mxu0 %v112
    %116 = vmatpush.msra.mxu0 %v111
    %117 = vmatpush.msra.mxu0 %v110
    %118 = vmatpush.msra.mxu0 %v109
    %119 = vmatpush.msra.mxu0 %v108
    %120 = vmatpush.msra.mxu0 %v107
    %121 = vmatpush.msra.mxu0 %v106
    %122 = vmatpush.msra.mxu0 %v105
    %123 = vmatpush.msra.mxu0 %v104
    %124 = vmatpush.msra.mxu0 %v103
    %125 = vmatpush.msra.mxu0 %v102
    %126 = vmatpush.msra.mxu0 %v101
    %127 = vmatpush.msra.mxu0 %v100
    %128 = vmatpush.msra.mxu0 %v99
    %129 = vmatpush.msra.mxu0 %v98
    %130 = vmatpush.msra.mxu0 %v97
    %131 = vmatmul.f32.gmra.mxu0 %v96
    %v132 = vpop.f32.mrf.mxu0
    %v133 = vadd.f32 %v114, %v132
    %134 = vdwg.mxu0
    %135 = vst [vmem:[%s2] sm:$0xff] %v133
    // Predicated region
    $region14: #{forward.1} parent=1 // pred_check
      _
    $region15: #{forward.1} parent=1 // pred_check_branch
      %137 = sbr.rel (0) target = $region17
    $region16: #{forward.1} parent=1 // pred_region
      _
    $region17: #{forward.1} parent=1 // pred_fallthru
      _
    // Predicated region
    $region18: #{forward.1} parent=1 // pred_check
      _
    $region19: #{forward.1} parent=1 // pred_check_branch
      %139 = sbr.rel (0) target = $region21
    $region20: #{forward.1} parent=1 // pred_region
      _
    $region21: #{forward.1} parent=1 // pred_fallthru
      _
    %140 = vsyncpa [#allocation3], 1

</llo_original>
